<compile_context>
chip_gen: v7x
topology: tpu7x:2x2x1
jax: 0.10.0
libtpu: 0.0.40
codegen_flags: <defaults>
</compile_context>

<pallas_src>
import jax
import jax.numpy as jnp
from jax.experimental import pallas as pl
from jax.experimental.pallas import tpu as pltpu


def _ste_kernel(x_ref, o_ref):
    # Elementwise binarize on the VPU: (x > 0) -> {0.0, 1.0} in float32.
    # (NaN > 0 is False -> 0.0, matching PyTorch's (input > 0).float().)
    o_ref[...] = (x_ref[...] > 0).astype(jnp.float32)


_LANE_CANDIDATES = (1024, 512, 256, 128)  # all multiples of 128 -> unmasked vst
_ROW_ALIGN = 64                           # safe sublane multiple for f32/bf16/i8
_BLOCK_ELEMS = 1 << 20                    # ~4 MiB per f32 buffer
_SMALL_BYTES = 1 << 20                    # below this, plain XLA is faster


def straight_through_estimator(x):
    """Forward of StraightThroughEstimator: (x > 0).float(), any shape."""
    orig_shape = x.shape
    total = x.size

    # Fast path: tiny tensors -- the pallas_call boundary + reshapes dominate.
    if total == 0 or total * x.dtype.itemsize < _SMALL_BYTES:
        return (x > 0).astype(jnp.float32)

    flat = x.reshape(-1)

    # Widest lane fold (multiple of 128) that divides total -> no pad/slice.
    lane = None
    for cand in _LANE_CANDIDATES:
        if total % cand == 0:
            lane = cand
            break
    padded_total = total
    if lane is None:
        # Rare fallback for non-128-divisible sizes: pad (costs ~2x traffic
        # from the extra pad + output-slice HBM passes).
        lane = 128
        padded_total = pl.cdiv(total, lane) * lane
        flat = jnp.pad(flat, (0, padded_total - total))

    rows = padded_total // lane
    x2d = flat.reshape(rows, lane)

    # Block sizing: ~4 MiB f32 per buffer when rows are plentiful; otherwise
    # split into >= 4 blocks so both v7x TensorCores stream and the
    # double-buffered pipeline has overlap.
    max_tile_r = max(_ROW_ALIGN, (_BLOCK_ELEMS // lane) // _ROW_ALIGN * _ROW_ALIGN)
    if rows > max_tile_r:
        tile_r = max_tile_r
    else:
        tile_r = max(_ROW_ALIGN, (rows // 4) // _ROW_ALIGN * _ROW_ALIGN)
        tile_r = min(tile_r, rows)

    # Ragged final block is fine: Pallas pads the last read and drops OOB writes.
    grid_r = pl.cdiv(rows, tile_r)

    out2d = pl.pallas_call(
        _ste_kernel,
        out_shape=jax.ShapeDtypeStruct((rows, lane), jnp.float32),
        grid=(grid_r,),
        in_specs=[pl.BlockSpec((tile_r, lane), lambda i: (i, 0))],
        out_specs=pl.BlockSpec((tile_r, lane), lambda i: (i, 0)),
        compiler_params=pltpu.CompilerParams(
            dimension_semantics=("parallel",),
            vmem_limit_bytes=32 * 1024 * 1024,
        ),
    )(x2d)

    out_flat = out2d.reshape(-1)
    if padded_total != total:
        out_flat = out_flat[:total]
    return out_flat.reshape(orig_shape)


# TODO(synk): STEFunction.backward (hardtanh on grad_output) is autograd-only
# and not part of the forward pass; it is not implemented here.


if __name__ == "__main__":
    key = jax.random.PRNGKey(0)
    k0, k1, k2 = jax.random.split(key, 3)

    # 1) Primary demo shape (NCHW conv-style activation) -- small-input fast path.
    x_small = jax.random.normal(k0, (2, 4, 16, 16), dtype=jnp.float32)
    x_small = x_small.at[0, 0, 0, :4].set(0.0)  # exercise strict '> 0'
    out_small = jax.block_until_ready(straight_through_estimator(x_small))
    ref_small = (x_small > 0).astype(jnp.float32)
    assert out_small.shape == x_small.shape and out_small.dtype == jnp.float32
    assert bool(jnp.all(out_small == ref_small))

    # 2) Kernel path, 128-divisible total with a ragged row count
    #    (rows % tile_r != 0) -- verifies masked final-block writes.
    x_ragged = jax.random.normal(k1, (8, 41, 1024), dtype=jnp.float32)
    out_ragged = jax.block_until_ready(straight_through_estimator(x_ragged))
    ref_ragged = (x_ragged > 0).astype(jnp.float32)
    assert out_ragged.shape == x_ragged.shape and out_ragged.dtype == jnp.float32
    assert bool(jnp.all(out_ragged == ref_ragged))

    # 3) Kernel path, non-128-divisible total -- exercises the pad fallback.
    x_pad = jax.random.normal(k2, (3, 7, 113, 127), dtype=jnp.float32)
    out_pad = jax.block_until_ready(straight_through_estimator(x_pad))
    ref_pad = (x_pad > 0).astype(jnp.float32)
    assert out_pad.shape == x_pad.shape and out_pad.dtype == jnp.float32
    assert bool(jnp.all(out_pad == ref_pad))

    print("KERNEL_OK")
</pallas_src>

<mosaic_0001>
module attributes {stable_mosaic.version = 11 : i64} {
  func.func @_ste_kernel(%arg0: i32, %arg1: memref<64x1024xf32, #tpu.memory_space<vmem>>, %arg2: memref<64x1024xf32, #tpu.memory_space<vmem>>) attributes {dimension_semantics = [#tpu.dimension_semantics<parallel>], iteration_bounds = array<i64: 6>, scalar_prefetch = 0 : i64, scratch_operands = 0 : i64, tpu.core_type = #tpu.core_type<tc>, window_params = [{transform_indices = @transform_0, window_bounds = array<i64: 64, 1024>}, {transform_indices = @transform_1, window_bounds = array<i64: 64, 1024>}]} {
    %c0 = arith.constant 0 : index
    %c0_0 = arith.constant 0 : index
    %0 = vector.load %arg1[%c0, %c0_0] : memref<64x1024xf32, #tpu.memory_space<vmem>>, vector<64x1024xf32>
    %cst = arith.constant 0.000000e+00 : f32
    %1 = vector.broadcast %cst : f32 to vector<64x1024xf32>
    %2 = arith.cmpf ogt, %0, %1 : vector<64x1024xf32>
    %3 = arith.extui %2 : vector<64x1024xi1> to vector<64x1024xi32>
    %4 = arith.sitofp %3 : vector<64x1024xi32> to vector<64x1024xf32>
    %c0_1 = arith.constant 0 : index
    %c0_2 = arith.constant 0 : index
    %5 = vector.load %arg2[%c0_1, %c0_2] : memref<64x1024xf32, #tpu.memory_space<vmem>>, vector<64x1024xf32>
    tpu.vector_store %arg2[%c0_1, %c0_2], %4 {strides = array<i32>} : memref<64x1024xf32, #tpu.memory_space<vmem>>, vector<64x1024xf32>,
    return
  }
  func.func @transform_0(%arg0: i32) -> (i32, i32) {
    %c0_i32 = arith.constant 0 : i32
    %c0_i32_0 = arith.constant 0 : i32
    return %arg0, %c0_i32 : i32, i32
  }
  func.func @transform_1(%arg0: i32) -> (i32, i32) {
    %c0_i32 = arith.constant 0 : i32
    %c0_i32_0 = arith.constant 0 : i32
    return %arg0, %c0_i32 : i32, i32
  }
}

</mosaic_0001>

<llo_original>
// kernel: tpu_custom_call.1
$region0: #{tpu_custom_call.1}
  #allocation0 [shape = 'u32[]', space=smem, size = 0x4, offset = 0x4, fixed_abs, tag = 'smem constant byte address 0x4 - core index']
  #allocation1 [shape = 'u32[144,128]{1,0:T(1,128)}', space=vmem, size = 0x12000, scoped, tag = 'internal scratch']
  %s0 = inlined_call_operand.hbm [shape: f32[328,1024], index: 0, kind: input, shape index: {}]
  %s1 = inlined_call_operand.hbm [shape: f32[328,1024], index: 1, kind: output, shape index: {}]
  %s2 = sld [smem:[#allocation0]]
  $region41: #{tpu_custom_call.1} parent=0
    _
  %s4 = ssub.s32 1, %s2
  %s5 = scalar_select 0, %s4, %s2
  $region1: #{tpu_custom_call.1} parent=0
    #allocation2 [shape = 'u8[524288]{0}', space=vmem, size = 0x80000, scoped, tag = 'input window, operand 0']
    #allocation3 [shape = 's32[2]{0}', space=sflag, size = 0x8, scoped, tag = 'scoped memory for tpu_custom_call.1']
    #allocation4 [shape = 's32[2]{0}', space=sflag, size = 0x8, scoped, tag = 'scoped memory for tpu_custom_call.1']
    #allocation5 [shape = 'u8[524288]{0}', space=vmem, size = 0x80000, scoped, tag = 'output window, operand 0']
    %6 = vsyncpa [#allocation3], 0
    %s7 = scalar_lea.sflag [#allocation3], 1
    %8 = vsyncpa %s7, 0
    %9 = vsyncpa [#allocation4], 0
    %s10 = scalar_lea.sflag [#allocation4], 1
    %11 = vsyncpa %s10, 0
    loop: start=0, step=1, limit=8
    $region2: #{tpu_custom_call.1} parent=1 // loop_pre_header
      _
    $region3: #{tpu_custom_call.1} parent=1 // loop_header
      %s13 = sphi 0, %s17
      %p14 = scmp.ge.s32.totalorder %s13, 8
      %s23 = sphi 0, %s25
      %s26 = sphi 0, %s23
      %s27 = sphi 0, %s26
      %s43 = sphi 0, %s27
      %s49 = sphi 0, %s51
      %s52 = sphi 0, %s49
      %s53 = sphi 0, %s52
      %s69 = sphi 0, %s53
    $region4: #{tpu_custom_call.1} parent=1 // loop_header_branch
      %16 = sbr.rel (%p14) target = $region8
    $region5: #{tpu_custom_call.1} parent=1 // loop_body
      %s18 = ssub.s32 %s13, 1
      %s19 = ssub.s32 %s13, 2
      %s20 = sadd.s32 %s13, 1
      %s21 = ssub.s32 %s13, %s20
      %p22 = scmp.eq.s32.totalorder %s21, 0
      %s24 = sadd.s32 %s23, 1
      %s25 = scalar_select %p22, %s23, %s24
      %p28 = pneg %p22
      %p29 = scmp.eq.s32.totalorder %s13, 5
      %p30 = por %p28, %p29
      %p31 = scmp.ne.s32.totalorder %s23, %s26
      %p32 = scmp.eq.s32.totalorder %s13, 0
      %p33 = por %p31, %p32
      %p34 = scmp.ne.s32.totalorder %s23, %s26
      %p35 = scmp.eq.s32.totalorder %s18, 5
      %p36 = por %p34, %p35
      %p37 = scmp.ne.s32.totalorder %s26, %s27
      %p38 = scmp.eq.s32.totalorder %s18, 0
      %p39 = por %p37, %p38
      %p40 = scmp.ne.s32.totalorder %s26, %s27
      %p41 = scmp.eq.s32.totalorder %s19, 5
      %p42 = por %p40, %p41
      %p44 = scmp.ne.s32.totalorder %s27, %s43
      %p45 = scmp.eq.s32.totalorder %s19, 0
      %p46 = por %p44, %p45
      %s47 = ssub.s32 %s13, %s20
      %p48 = scmp.eq.s32.totalorder %s47, 0
      %s50 = sadd.s32 %s49, 1
      %s51 = scalar_select %p48, %s49, %s50
      %p54 = pneg %p48
      %p55 = scmp.eq.s32.totalorder %s13, 5
      %p56 = por %p54, %p55
      %p57 = scmp.ne.s32.totalorder %s49, %s52
      %p58 = scmp.eq.s32.totalorder %s13, 0
      %p59 = por %p57, %p58
      %p60 = scmp.ne.s32.totalorder %s49, %s52
      %p61 = scmp.eq.s32.totalorder %s18, 5
      %p62 = por %p60, %p61
      %p63 = scmp.ne.s32.totalorder %s52, %s53
      %p64 = scmp.eq.s32.totalorder %s18, 0
      %p65 = por %p63, %p64
      %p66 = scmp.ne.s32.totalorder %s52, %s53
      %p67 = scmp.eq.s32.totalorder %s19, 5
      %p68 = por %p66, %p67
      %p70 = scmp.ne.s32.totalorder %s53, %s69
      %p71 = scmp.eq.s32.totalorder %s19, 0
      %p72 = por %p70, %p71
      %p73 = scmp.le.s32.totalorder 1, %s13
      %p74 = scmp.lt.s32.totalorder %s13, 7
      %p75 = pnand %p73, %p74
      %p76 = pneg %p75
      // Predicated region
      $region9: #{tpu_custom_call.1} parent=5 // pred_check
        _
      $region10: #{tpu_custom_call.1} parent=5 // pred_check_branch
        %78 = sbr.rel (%p75) target = $region12
      $region11: #{tpu_custom_call.1} parent=5 // pred_region
        %s79 = ssub.s32 %s13, 1
      $region12: #{tpu_custom_call.1} parent=5 // pred_fallthru
        _
      %p80 = scmp.lt.s32.totalorder %s13, 6
      // Predicated region
      $region13: #{tpu_custom_call.1} parent=5 // pred_check
        %p81 = pneg %p80
      $region14: #{tpu_custom_call.1} parent=5 // pred_check_branch
        %83 = sbr.rel (%p81) target = $region16
      $region15: #{tpu_custom_call.1} parent=5 // pred_region
        // Predicated region
        $region17: #{tpu_custom_call.1} parent=15 // pred_check
          %p84 = pneg %p33
        $region18: #{tpu_custom_call.1} parent=15 // pred_check_branch
          %86 = sbr.rel (%p84) target = $region20
        $region19: #{tpu_custom_call.1} parent=15 // pred_region
          %s87 = sand.u32 %s23, 1
          %s88 = scalar_lea.sflag [#allocation3], %s87
          %s89 = sand.u32 %s23, 1
          %s90 = smul.addr %s89, 512
          %s91 = scalar_lea.vmem [#allocation2], %s90
          %s92 = smul.u32 8, %s13
          %s93 = ssub.s32 41, %s92
          %p94 = scmp.lt.s32.totalorder %s93, 8
          %s95 = scalar_select %p94, %s93, 8
          %s96 = smul.u32 128, %s95
          %s97 = smul.u32 %s96, 8
          %s99 = ssub.s32 8192, %s97
          %100 = vsyncadd %s88, %s99
          %p101 = scmp.ne.s32.totalorder 0, %s97
          %s102 = smul.addr %s92, 8
          %s103 = smul.addr %s102, 128
          %s104 = scalar_lea.hbm %s0, %s103
          %s105 = smul.u32 64, %s95
          %s106 = sshll.u32 %s91, 4
          %s107 = int_to_ptr.vmem [resolvable:$true] %s106
          %s108 = sshll.u32 %s105, 4
          %112 = dma.hbm_to_vmem [thread:$0]  (%p101), %s104, %s108, %s107, %s88, 1024, 1024, 64
        $region20: #{tpu_custom_call.1} parent=15 // pred_fallthru
          _
      $region16: #{tpu_custom_call.1} parent=5 // pred_fallthru
        _
      %p113 = scmp.le.s32.totalorder 1, %s13
      %p114 = scmp.lt.s32.totalorder %s13, 7
      %p115 = pnand %p113, %p114
      %p116 = pneg %p115
      // Predicated region
      $region21: #{tpu_custom_call.1} parent=5 // pred_check
        _
      $region22: #{tpu_custom_call.1} parent=5 // pred_check_branch
        %118 = sbr.rel (%p115) target = $region24
      $region23: #{tpu_custom_call.1} parent=5 // pred_region
        %s119 = ssub.s32 %s13, 1
        %s120 = sand.u32 %s26, 1
        %s121 = scalar_lea.sflag [#allocation3], %s120
        %s122 = sand.u32 %s26, 1
        %s123 = smul.addr %s122, 512
        %s124 = scalar_lea.vmem [#allocation2], %s123
        // Predicated region
        $region25: #{tpu_custom_call.1} parent=23 // pred_check
          %p125 = pneg %p39
        $region26: #{tpu_custom_call.1} parent=23 // pred_check_branch
          %127 = sbr.rel (%p125) target = $region28
        $region27: #{tpu_custom_call.1} parent=23 // pred_region
          %128 = dma.done %s121, 8192
        $region28: #{tpu_custom_call.1} parent=23 // pred_fallthru
          _
        %s129 = sand.u32 %s26, 1
        %s130 = scalar_lea.sflag [#allocation3], %s129
        %s131 = sand.u32 %s26, 1
        %s132 = smul.addr %s131, 512
        %s133 = scalar_lea.vmem [#allocation2], %s132
        %p134 = pneg %p39
        %p135 = pneg %p36
        %p136 = pneg %p65
        %p137 = pneg %p62
        %s138 = sand.u32 %s52, 1
        %s139 = scalar_lea.sflag [#allocation4], %s138
        %s140 = sand.u32 %s52, 1
        %s141 = smul.addr %s140, 512
        %s142 = scalar_lea.vmem [#allocation5], %s141
        %s143 = smul.u32 8, %s18
        %s144 = ssub.s32 41, %s143
        %p145 = scmp.lt.s32.totalorder %s144, 8
        %s146 = scalar_select %p145, %s144, 8
        %s147 = smul.u32 128, %s146
        %s148 = smul.u32 %s147, 8
        %s149 = smul.u32 8, %s18
        %s150 = ssub.s32 41, %s149
        %p151 = scmp.lt.s32.totalorder %s150, 8
        %s152 = scalar_select %p151, %s150, 8
        %s153 = smul.u32 128, %s152
        %s154 = smul.u32 %s153, 8
        %v155 = vld [vmem:[%s124] sm:$0xff]
        %v156 = vld [vmem:[%s124 + $0x8] sm:$0xff]
        %v157 = vld [vmem:[%s124 + $0x10] sm:$0xff]
        %v158 = vld [vmem:[%s124 + $0x18] sm:$0xff]
        %v159 = vld [vmem:[%s124 + $0x20] sm:$0xff]
        %v160 = vld [vmem:[%s124 + $0x28] sm:$0xff]
        %v161 = vld [vmem:[%s124 + $0x30] sm:$0xff]
        %v162 = vld [vmem:[%s124 + $0x38] sm:$0xff]
        %v163 = vld [vmem:[%s124 + $0x40] sm:$0xff]
        %v164 = vld [vmem:[%s124 + $0x48] sm:$0xff]
        %v165 = vld [vmem:[%s124 + $0x50] sm:$0xff]
        %v166 = vld [vmem:[%s124 + $0x58] sm:$0xff]
        %v167 = vld [vmem:[%s124 + $0x60] sm:$0xff]
        %v168 = vld [vmem:[%s124 + $0x68] sm:$0xff]
        %v169 = vld [vmem:[%s124 + $0x70] sm:$0xff]
        %v170 = vld [vmem:[%s124 + $0x78] sm:$0xff]
        %v171 = vld [vmem:[%s124 + $0x80] sm:$0xff]
        %v172 = vld [vmem:[%s124 + $0x88] sm:$0xff]
        %v173 = vld [vmem:[%s124 + $0x90] sm:$0xff]
        %v174 = vld [vmem:[%s124 + $0x98] sm:$0xff]
        %v175 = vld [vmem:[%s124 + $0xa0] sm:$0xff]
        %v176 = vld [vmem:[%s124 + $0xa8] sm:$0xff]
        %v177 = vld [vmem:[%s124 + $0xb0] sm:$0xff]
        %v178 = vld [vmem:[%s124 + $0xb8] sm:$0xff]
        %v179 = vld [vmem:[%s124 + $0xc0] sm:$0xff]
        %v180 = vld [vmem:[%s124 + $0xc8] sm:$0xff]
        %v181 = vld [vmem:[%s124 + $0xd0] sm:$0xff]
        %v182 = vld [vmem:[%s124 + $0xd8] sm:$0xff]
        %v183 = vld [vmem:[%s124 + $0xe0] sm:$0xff]
        %v184 = vld [vmem:[%s124 + $0xe8] sm:$0xff]
        %v185 = vld [vmem:[%s124 + $0xf0] sm:$0xff]
        %v186 = vld [vmem:[%s124 + $0xf8] sm:$0xff]
        %v187 = vld [vmem:[%s124 + $0x100] sm:$0xff]
        %v188 = vld [vmem:[%s124 + $0x108] sm:$0xff]
        %v189 = vld [vmem:[%s124 + $0x110] sm:$0xff]
        %v190 = vld [vmem:[%s124 + $0x118] sm:$0xff]
        %v191 = vld [vmem:[%s124 + $0x120] sm:$0xff]
        %v192 = vld [vmem:[%s124 + $0x128] sm:$0xff]
        %v193 = vld [vmem:[%s124 + $0x130] sm:$0xff]
        %v194 = vld [vmem:[%s124 + $0x138] sm:$0xff]
        %v195 = vld [vmem:[%s124 + $0x140] sm:$0xff]
        %v196 = vld [vmem:[%s124 + $0x148] sm:$0xff]
        %v197 = vld [vmem:[%s124 + $0x150] sm:$0xff]
        %v198 = vld [vmem:[%s124 + $0x158] sm:$0xff]
        %v199 = vld [vmem:[%s124 + $0x160] sm:$0xff]
        %v200 = vld [vmem:[%s124 + $0x168] sm:$0xff]
        %v201 = vld [vmem:[%s124 + $0x170] sm:$0xff]
        %v202 = vld [vmem:[%s124 + $0x178] sm:$0xff]
        %v203 = vld [vmem:[%s124 + $0x180] sm:$0xff]
        %v204 = vld [vmem:[%s124 + $0x188] sm:$0xff]
        %v205 = vld [vmem:[%s124 + $0x190] sm:$0xff]
        %v206 = vld [vmem:[%s124 + $0x198] sm:$0xff]
        %v207 = vld [vmem:[%s124 + $0x1a0] sm:$0xff]
        %v208 = vld [vmem:[%s124 + $0x1a8] sm:$0xff]
        %v209 = vld [vmem:[%s124 + $0x1b0] sm:$0xff]
        %v210 = vld [vmem:[%s124 + $0x1b8] sm:$0xff]
        %v211 = vld [vmem:[%s124 + $0x1c0] sm:$0xff]
        %v212 = vld [vmem:[%s124 + $0x1c8] sm:$0xff]
        %v213 = vld [vmem:[%s124 + $0x1d0] sm:$0xff]
        %v214 = vld [vmem:[%s124 + $0x1d8] sm:$0xff]
        %v215 = vld [vmem:[%s124 + $0x1e0] sm:$0xff]
        %v216 = vld [vmem:[%s124 + $0x1e8] sm:$0xff]
        %v217 = vld [vmem:[%s124 + $0x1f0] sm:$0xff]
        %v218 = vld [vmem:[%s124 + $0x1f8] sm:$0xff]
        %vm219 = vcmp.gt.f32.partialorder %v155, 0.0
        %vm220 = vcmp.gt.f32.partialorder %v156, 0.0
        %vm221 = vcmp.gt.f32.partialorder %v157, 0.0
        %vm222 = vcmp.gt.f32.partialorder %v158, 0.0
        %vm223 = vcmp.gt.f32.partialorder %v159, 0.0
        %vm224 = vcmp.gt.f32.partialorder %v160, 0.0
        %vm225 = vcmp.gt.f32.partialorder %v161, 0.0
        %vm226 = vcmp.gt.f32.partialorder %v162, 0.0
        %vm227 = vcmp.gt.f32.partialorder %v163, 0.0
        %vm228 = vcmp.gt.f32.partialorder %v164, 0.0
        %vm229 = vcmp.gt.f32.partialorder %v165, 0.0
        %vm230 = vcmp.gt.f32.partialorder %v166, 0.0
        %vm231 = vcmp.gt.f32.partialorder %v167, 0.0
        %vm232 = vcmp.gt.f32.partialorder %v168, 0.0
        %vm233 = vcmp.gt.f32.partialorder %v169, 0.0
        %vm234 = vcmp.gt.f32.partialorder %v170, 0.0
        %vm235 = vcmp.gt.f32.partialorder %v171, 0.0
        %vm236 = vcmp.gt.f32.partialorder %v172, 0.0
        %vm237 = vcmp.gt.f32.partialorder %v173, 0.0
        %vm238 = vcmp.gt.f32.partialorder %v174, 0.0
        %vm239 = vcmp.gt.f32.partialorder %v175, 0.0
        %vm240 = vcmp.gt.f32.partialorder %v176, 0.0
        %vm241 = vcmp.gt.f32.partialorder %v177, 0.0
        %vm242 = vcmp.gt.f32.partialorder %v178, 0.0
        %vm243 = vcmp.gt.f32.partialorder %v179, 0.0
        %vm244 = vcmp.gt.f32.partialorder %v180, 0.0
        %vm245 = vcmp.gt.f32.partialorder %v181, 0.0
        %vm246 = vcmp.gt.f32.partialorder %v182, 0.0
        %vm247 = vcmp.gt.f32.partialorder %v183, 0.0
        %vm248 = vcmp.gt.f32.partialorder %v184, 0.0
        %vm249 = vcmp.gt.f32.partialorder %v185, 0.0
        %vm250 = vcmp.gt.f32.partialorder %v186, 0.0
        %vm251 = vcmp.gt.f32.partialorder %v187, 0.0
        %vm252 = vcmp.gt.f32.partialorder %v188, 0.0
        %vm253 = vcmp.gt.f32.partialorder %v189, 0.0
        %vm254 = vcmp.gt.f32.partialorder %v190, 0.0
        %vm255 = vcmp.gt.f32.partialorder %v191, 0.0
        %vm256 = vcmp.gt.f32.partialorder %v192, 0.0
        %vm257 = vcmp.gt.f32.partialorder %v193, 0.0
        %vm258 = vcmp.gt.f32.partialorder %v194, 0.0
        %vm259 = vcmp.gt.f32.partialorder %v195, 0.0
        %vm260 = vcmp.gt.f32.partialorder %v196, 0.0
        %vm261 = vcmp.gt.f32.partialorder %v197, 0.0
        %vm262 = vcmp.gt.f32.partialorder %v198, 0.0
        %vm263 = vcmp.gt.f32.partialorder %v199, 0.0
        %vm264 = vcmp.gt.f32.partialorder %v200, 0.0
        %vm265 = vcmp.gt.f32.partialorder %v201, 0.0
        %vm266 = vcmp.gt.f32.partialorder %v202, 0.0
        %vm267 = vcmp.gt.f32.partialorder %v203, 0.0
        %vm268 = vcmp.gt.f32.partialorder %v204, 0.0
        %vm269 = vcmp.gt.f32.partialorder %v205, 0.0
        %vm270 = vcmp.gt.f32.partialorder %v206, 0.0
        %vm271 = vcmp.gt.f32.partialorder %v207, 0.0
        %vm272 = vcmp.gt.f32.partialorder %v208, 0.0
        %vm273 = vcmp.gt.f32.partialorder %v209, 0.0
        %vm274 = vcmp.gt.f32.partialorder %v210, 0.0
        %vm275 = vcmp.gt.f32.partialorder %v211, 0.0
        %vm276 = vcmp.gt.f32.partialorder %v212, 0.0
        %vm277 = vcmp.gt.f32.partialorder %v213, 0.0
        %vm278 = vcmp.gt.f32.partialorder %v214, 0.0
        %vm279 = vcmp.gt.f32.partialorder %v215, 0.0
        %vm280 = vcmp.gt.f32.partialorder %v216, 0.0
        %vm281 = vcmp.gt.f32.partialorder %v217, 0.0
        %vm282 = vcmp.gt.f32.partialorder %v218, 0.0
        %v283 = vsel %vm219, 1, 0
        %v284 = vsel %vm220, 1, 0
        %v285 = vsel %vm221, 1, 0
        %v286 = vsel %vm222, 1, 0
        %v287 = vsel %vm223, 1, 0
        %v288 = vsel %vm224, 1, 0
        %v289 = vsel %vm225, 1, 0
        %v290 = vsel %vm226, 1, 0
        %v291 = vsel %vm227, 1, 0
        %v292 = vsel %vm228, 1, 0
        %v293 = vsel %vm229, 1, 0
        %v294 = vsel %vm230, 1, 0
        %v295 = vsel %vm231, 1, 0
        %v296 = vsel %vm232, 1, 0
        %v297 = vsel %vm233, 1, 0
        %v298 = vsel %vm234, 1, 0
        %v299 = vsel %vm235, 1, 0
        %v300 = vsel %vm236, 1, 0
        %v301 = vsel %vm237, 1, 0
        %v302 = vsel %vm238, 1, 0
        %v303 = vsel %vm239, 1, 0
        %v304 = vsel %vm240, 1, 0
        %v305 = vsel %vm241, 1, 0
        %v306 = vsel %vm242, 1, 0
        %v307 = vsel %vm243, 1, 0
        %v308 = vsel %vm244, 1, 0
        %v309 = vsel %vm245, 1, 0
        %v310 = vsel %vm246, 1, 0
        %v311 = vsel %vm247, 1, 0
        %v312 = vsel %vm248, 1, 0
        %v313 = vsel %vm249, 1, 0
        %v314 = vsel %vm250, 1, 0
        %v315 = vsel %vm251, 1, 0
        %v316 = vsel %vm252, 1, 0
        %v317 = vsel %vm253, 1, 0
        %v318 = vsel %vm254, 1, 0
        %v319 = vsel %vm255, 1, 0
        %v320 = vsel %vm256, 1, 0
        %v321 = vsel %vm257, 1, 0
        %v322 = vsel %vm258, 1, 0
        %v323 = vsel %vm259, 1, 0
        %v324 = vsel %vm260, 1, 0
        %v325 = vsel %vm261, 1, 0
        %v326 = vsel %vm262, 1, 0
        %v327 = vsel %vm263, 1, 0
        %v328 = vsel %vm264, 1, 0
        %v329 = vsel %vm265, 1, 0
        %v330 = vsel %vm266, 1, 0
        %v331 = vsel %vm267, 1, 0
        %v332 = vsel %vm268, 1, 0
        %v333 = vsel %vm269, 1, 0
        %v334 = vsel %vm270, 1, 0
        %v335 = vsel %vm271, 1, 0
        %v336 = vsel %vm272, 1, 0
        %v337 = vsel %vm273, 1, 0
        %v338 = vsel %vm274, 1, 0
        %v339 = vsel %vm275, 1, 0
        %v340 = vsel %vm276, 1, 0
        %v341 = vsel %vm277, 1, 0
        %v342 = vsel %vm278, 1, 0
        %v343 = vsel %vm279, 1, 0
        %v344 = vsel %vm280, 1, 0
        %v345 = vsel %vm281, 1, 0
        %v346 = vsel %vm282, 1, 0
        %v347 = vcvt.s32.f32 %v283
        %v348 = vcvt.s32.f32 %v284
        %v349 = vcvt.s32.f32 %v285
        %v350 = vcvt.s32.f32 %v286
        %v351 = vcvt.s32.f32 %v287
        %v352 = vcvt.s32.f32 %v288
        %v353 = vcvt.s32.f32 %v289
        %v354 = vcvt.s32.f32 %v290
        %v355 = vcvt.s32.f32 %v291
        %v356 = vcvt.s32.f32 %v292
        %v357 = vcvt.s32.f32 %v293
        %v358 = vcvt.s32.f32 %v294
        %v359 = vcvt.s32.f32 %v295
        %v360 = vcvt.s32.f32 %v296
        %v361 = vcvt.s32.f32 %v297
        %v362 = vcvt.s32.f32 %v298
        %v363 = vcvt.s32.f32 %v299
        %v364 = vcvt.s32.f32 %v300
        %v365 = vcvt.s32.f32 %v301
        %v366 = vcvt.s32.f32 %v302
        %v367 = vcvt.s32.f32 %v303
        %v368 = vcvt.s32.f32 %v304
        %v369 = vcvt.s32.f32 %v305
        %v370 = vcvt.s32.f32 %v306
        %v371 = vcvt.s32.f32 %v307
        %v372 = vcvt.s32.f32 %v308
        %v373 = vcvt.s32.f32 %v309
        %v374 = vcvt.s32.f32 %v310
        %v375 = vcvt.s32.f32 %v311
        %v376 = vcvt.s32.f32 %v312
        %v377 = vcvt.s32.f32 %v313
        %v378 = vcvt.s32.f32 %v314
        %v379 = vcvt.s32.f32 %v315
        %v380 = vcvt.s32.f32 %v316
        %v381 = vcvt.s32.f32 %v317
        %v382 = vcvt.s32.f32 %v318
        %v383 = vcvt.s32.f32 %v319
        %v384 = vcvt.s32.f32 %v320
        %v385 = vcvt.s32.f32 %v321
        %v386 = vcvt.s32.f32 %v322
        %v387 = vcvt.s32.f32 %v323
        %v388 = vcvt.s32.f32 %v324
        %v389 = vcvt.s32.f32 %v325
        %v390 = vcvt.s32.f32 %v326
        %v391 = vcvt.s32.f32 %v327
        %v392 = vcvt.s32.f32 %v328
        %v393 = vcvt.s32.f32 %v329
        %v394 = vcvt.s32.f32 %v330
        %v395 = vcvt.s32.f32 %v331
        %v396 = vcvt.s32.f32 %v332
        %v397 = vcvt.s32.f32 %v333
        %v398 = vcvt.s32.f32 %v334
        %v399 = vcvt.s32.f32 %v335
        %v400 = vcvt.s32.f32 %v336
        %v401 = vcvt.s32.f32 %v337
        %v402 = vcvt.s32.f32 %v338
        %v403 = vcvt.s32.f32 %v339
        %v404 = vcvt.s32.f32 %v340
        %v405 = vcvt.s32.f32 %v341
        %v406 = vcvt.s32.f32 %v342
        %v407 = vcvt.s32.f32 %v343
        %v408 = vcvt.s32.f32 %v344
        %v409 = vcvt.s32.f32 %v345
        %v410 = vcvt.s32.f32 %v346
        %411 = vst [vmem:[%s142] sm:$0xff] %v347
        %412 = vst [vmem:[%s142 + $0x8] sm:$0xff] %v348
        %413 = vst [vmem:[%s142 + $0x10] sm:$0xff] %v349
        %414 = vst [vmem:[%s142 + $0x18] sm:$0xff] %v350
        %415 = vst [vmem:[%s142 + $0x20] sm:$0xff] %v351
        %416 = vst [vmem:[%s142 + $0x28] sm:$0xff] %v352
        %417 = vst [vmem:[%s142 + $0x30] sm:$0xff] %v353
        %418 = vst [vmem:[%s142 + $0x38] sm:$0xff] %v354
        %419 = vst [vmem:[%s142 + $0x40] sm:$0xff] %v355
        %420 = vst [vmem:[%s142 + $0x48] sm:$0xff] %v356
        %421 = vst [vmem:[%s142 + $0x50] sm:$0xff] %v357
        %422 = vst [vmem:[%s142 + $0x58] sm:$0xff] %v358
        %423 = vst [vmem:[%s142 + $0x60] sm:$0xff] %v359
        %424 = vst [vmem:[%s142 + $0x68] sm:$0xff] %v360
        %425 = vst [vmem:[%s142 + $0x70] sm:$0xff] %v361
        %426 = vst [vmem:[%s142 + $0x78] sm:$0xff] %v362
        %427 = vst [vmem:[%s142 + $0x80] sm:$0xff] %v363
        %428 = vst [vmem:[%s142 + $0x88] sm:$0xff] %v364
        %429 = vst [vmem:[%s142 + $0x90] sm:$0xff] %v365
        %430 = vst [vmem:[%s142 + $0x98] sm:$0xff] %v366
        %431 = vst [vmem:[%s142 + $0xa0] sm:$0xff] %v367
        %432 = vst [vmem:[%s142 + $0xa8] sm:$0xff] %v368
        %433 = vst [vmem:[%s142 + $0xb0] sm:$0xff] %v369
        %434 = vst [vmem:[%s142 + $0xb8] sm:$0xff] %v370
        %435 = vst [vmem:[%s142 + $0xc0] sm:$0xff] %v371
        %436 = vst [vmem:[%s142 + $0xc8] sm:$0xff] %v372
        %437 = vst [vmem:[%s142 + $0xd0] sm:$0xff] %v373
        %438 = vst [vmem:[%s142 + $0xd8] sm:$0xff] %v374
        %439 = vst [vmem:[%s142 + $0xe0] sm:$0xff] %v375
        %440 = vst [vmem:[%s142 + $0xe8] sm:$0xff] %v376
        %441 = vst [vmem:[%s142 + $0xf0] sm:$0xff] %v377
        %442 = vst [vmem:[%s142 + $0xf8] sm:$0xff] %v378
        %443 = vst [vmem:[%s142 + $0x100] sm:$0xff] %v379
        %444 = vst [vmem:[%s142 + $0x108] sm:$0xff] %v380
        %445 = vst [vmem:[%s142 + $0x110] sm:$0xff] %v381
        %446 = vst [vmem:[%s142 + $0x118] sm:$0xff] %v382
        %447 = vst [vmem:[%s142 + $0x120] sm:$0xff] %v383
        %448 = vst [vmem:[%s142 + $0x128] sm:$0xff] %v384
        %449 = vst [vmem:[%s142 + $0x130] sm:$0xff] %v385
        %450 = vst [vmem:[%s142 + $0x138] sm:$0xff] %v386
        %451 = vst [vmem:[%s142 + $0x140] sm:$0xff] %v387
        %452 = vst [vmem:[%s142 + $0x148] sm:$0xff] %v388
        %453 = vst [vmem:[%s142 + $0x150] sm:$0xff] %v389
        %454 = vst [vmem:[%s142 + $0x158] sm:$0xff] %v390
        %455 = vst [vmem:[%s142 + $0x160] sm:$0xff] %v391
        %456 = vst [vmem:[%s142 + $0x168] sm:$0xff] %v392
        %457 = vst [vmem:[%s142 + $0x170] sm:$0xff] %v393
        %458 = vst [vmem:[%s142 + $0x178] sm:$0xff] %v394
        %459 = vst [vmem:[%s142 + $0x180] sm:$0xff] %v395
        %460 = vst [vmem:[%s142 + $0x188] sm:$0xff] %v396
        %461 = vst [vmem:[%s142 + $0x190] sm:$0xff] %v397
        %462 = vst [vmem:[%s142 + $0x198] sm:$0xff] %v398
        %463 = vst [vmem:[%s142 + $0x1a0] sm:$0xff] %v399
        %464 = vst [vmem:[%s142 + $0x1a8] sm:$0xff] %v400
        %465 = vst [vmem:[%s142 + $0x1b0] sm:$0xff] %v401
        %466 = vst [vmem:[%s142 + $0x1b8] sm:$0xff] %v402
        %467 = vst [vmem:[%s142 + $0x1c0] sm:$0xff] %v403
        %468 = vst [vmem:[%s142 + $0x1c8] sm:$0xff] %v404
        %469 = vst [vmem:[%s142 + $0x1d0] sm:$0xff] %v405
        %470 = vst [vmem:[%s142 + $0x1d8] sm:$0xff] %v406
        %471 = vst [vmem:[%s142 + $0x1e0] sm:$0xff] %v407
        %472 = vst [vmem:[%s142 + $0x1e8] sm:$0xff] %v408
        %473 = vst [vmem:[%s142 + $0x1f0] sm:$0xff] %v409
        %474 = vst [vmem:[%s142 + $0x1f8] sm:$0xff] %v410
        %s475 = sand.u32 %s52, 1
        %s476 = scalar_lea.sflag [#allocation4], %s475
        %s477 = sand.u32 %s52, 1
        %s478 = smul.addr %s477, 512
        %s479 = scalar_lea.vmem [#allocation5], %s478
        // Predicated region
        $region29: #{tpu_custom_call.1} parent=23 // pred_check
          %p480 = pneg %p62
        $region30: #{tpu_custom_call.1} parent=23 // pred_check_branch
          %482 = sbr.rel (%p480) target = $region32
        $region31: #{tpu_custom_call.1} parent=23 // pred_region
          %s483 = smul.u32 8, %s18
          %s484 = ssub.s32 41, %s483
          %p485 = scmp.lt.s32.totalorder %s484, 8
          %s486 = scalar_select %p485, %s484, 8
          %s487 = smul.u32 128, %s486
          %s488 = smul.u32 %s487, 8
          %s490 = ssub.s32 8192, %s488
          %491 = vsyncadd %s476, %s490
          %p492 = scmp.ne.s32.totalorder 0, %s488
          %s493 = smul.addr %s483, 8
          %s494 = smul.addr %s493, 128
          %s495 = scalar_lea.hbm %s1, %s494
          %s496 = smul.u32 64, %s486
          %s497 = sshll.u32 %s479, 4
          %s498 = int_to_ptr.vmem [resolvable:$true] %s497
          %s499 = sshll.u32 %s496, 4
          %503 = dma.vmem_to_hbm [thread:$0]  (%p492), %s498, %s499, %s495, %s476, 1024, 1024, 64
        $region32: #{tpu_custom_call.1} parent=23 // pred_fallthru
          _
      $region24: #{tpu_custom_call.1} parent=5 // pred_fallthru
        _
      %p504 = scmp.le.s32.totalorder 2, %s13
      // Predicated region
      $region33: #{tpu_custom_call.1} parent=5 // pred_check
        %p505 = pneg %p504
      $region34: #{tpu_custom_call.1} parent=5 // pred_check_branch
        %507 = sbr.rel (%p505) target = $region36
      $region35: #{tpu_custom_call.1} parent=5 // pred_region
        %s508 = ssub.s32 %s13, 2
        // Predicated region
        $region37: #{tpu_custom_call.1} parent=35 // pred_check
          %p509 = pneg %p68
        $region38: #{tpu_custom_call.1} parent=35 // pred_check_branch
          %511 = sbr.rel (%p509) target = $region40
        $region39: #{tpu_custom_call.1} parent=35 // pred_region
          %s512 = sand.u32 %s53, 1
          %s513 = scalar_lea.sflag [#allocation4], %s512
          %s514 = sand.u32 %s53, 1
          %s515 = smul.addr %s514, 512
          %s516 = scalar_lea.vmem [#allocation5], %s515
          %517 = dma.done %s513, 8192
        $region40: #{tpu_custom_call.1} parent=35 // pred_fallthru
          _
      $region36: #{tpu_custom_call.1} parent=5 // pred_fallthru
        _
    $region6: #{tpu_custom_call.1} parent=1 // loop_footer
      %s17 = sadd.s32 1, %s13
    $region7: #{tpu_custom_call.1} parent=1 // loop_footer_branch
      %12 = sbr.rel target = $region3
    $region8: #{tpu_custom_call.1} parent=1 // loop_exit
      _
    %518 = vsyncpa [#allocation3], 1
    %s519 = scalar_lea.sflag [#allocation3], 1
    %520 = vsyncpa %s519, 1
    %521 = vsyncpa [#allocation4], 1
    %s522 = scalar_lea.sflag [#allocation4], 1
    %523 = vsyncpa %s522, 1

</llo_original>
